<compile_context>
chip_gen: v6e
topology: v6e:2x2x1
jax: 0.10.0
libtpu: 0.0.40
codegen_flags: <defaults>
</compile_context>

<pallas_src>
import jax
import jax.numpy as jnp
from jax.experimental import pallas as pl
from jax.experimental.pallas import tpu as pltpu

_LANES = 128
_SUBLANES = 8
# 2048 rows * 128 lanes * 4 B = 1 MiB per f32 input block. Two (or three)
# double-buffered input streams plus the resident f32 accumulator block stay
# well inside the default scoped VMEM on v5e/v6e/v7x.
_MAX_TILE_ROWS = 2048
# Leading "split" grid axis (marked parallel) so v7x's two TensorCores can each
# take half of the row range of a single large tensor.
_NUM_SPLITS = 2
# Fuse same-shaped list elements into one pallas_call (amortize launch /
# pipeline-ramp cost) only while the jnp.stack copy stays cheap.
_FUSE_MAX_ELEMS = 1 << 22


def _cdiv(a, b):
    return -(-a // b)


def _plan_tiling(numel):
    """-> (padded_rows, tile_rows, splits, tiles_per_split) for a flat tensor."""
    rows = _cdiv(numel, _LANES)
    rows = _cdiv(rows, _SUBLANES) * _SUBLANES       # sublane-dense
    if rows <= _MAX_TILE_ROWS:
        return rows, rows, 1, 1
    tile_rows = _MAX_TILE_ROWS
    n_tiles = _cdiv(rows, tile_rows)
    splits = _NUM_SPLITS if n_tiles >= 2 * _NUM_SPLITS else 1
    tiles_per_split = _cdiv(n_tiles, splits)
    return splits * tiles_per_split * tile_rows, tile_rows, splits, tiles_per_split


def _to_slab(x, padded_rows):
    """Flatten to a lane/sublane-dense (padded_rows, 128) slab, zero-padded.

    Zero padding is exact: padded entries contribute w * |0 - 0| = 0.
    """
    flat = jnp.ravel(x)
    pad = padded_rows * _LANES - flat.size
    if pad:
        flat = jnp.pad(flat, (0, pad))
    return flat.reshape(padded_rows, _LANES)


# ---------------------------------------------------------------------------
# Kernels: accumulate per-tile |p - t| (optionally * w) into the resident
# f32 output block; init at the first row-tile of each (element, split).
# ---------------------------------------------------------------------------

def _l1_acc_kernel(p_ref, t_ref, acc_ref):
    @pl.when(pl.program_id(2) == 0)
    def _init():
        acc_ref[...] = jnp.zeros_like(acc_ref)

    p = p_ref[...].astype(jnp.float32)
    t = t_ref[...].astype(jnp.float32)
    acc_ref[...] += jnp.abs(p - t)


def _weighted_l1_acc_kernel(p_ref, t_ref, w_ref, acc_ref):
    @pl.when(pl.program_id(2) == 0)
    def _init():
        acc_ref[...] = jnp.zeros_like(acc_ref)

    p = p_ref[...].astype(jnp.float32)
    t = t_ref[...].astype(jnp.float32)
    w = w_ref[...].astype(jnp.float32)           # promote weight in-kernel
    acc_ref[...] += w * jnp.abs(p - t)


def _partial_l1_sums(p3, t3, w3, tile_rows, splits, tiles_per_split):
    """p3/t3: (N, padded_rows, 128); w3: None or (1 or N, padded_rows, 128).

    Returns (N,) f32 per-element sums of (w *) |p - t|.
    """
    n_el = p3.shape[0]
    grid = (n_el, splits, tiles_per_split)

    def pt_map(n, s, j):
        return (n, s * tiles_per_split + j, 0)

    in_specs = [pl.BlockSpec((None, tile_rows, _LANES), pt_map),
                pl.BlockSpec((None, tile_rows, _LANES), pt_map)]
    operands = [p3, t3]
    if w3 is None:
        kernel = _l1_acc_kernel
    else:
        if w3.shape[0] == 1:
            w_map = lambda n, s, j: (0, s * tiles_per_split + j, 0)
        else:
            w_map = pt_map
        in_specs.append(pl.BlockSpec((None, tile_rows, _LANES), w_map))
        operands.append(w3)
        kernel = _weighted_l1_acc_kernel

    out_shape = jax.ShapeDtypeStruct((n_el, splits, tile_rows, _LANES),
                                     jnp.float32)
    out_spec = pl.BlockSpec((None, None, tile_rows, _LANES),
                            lambda n, s, j: (n, s, 0, 0))

    total = n_el * p3.shape[1] * _LANES
    bytes_accessed = sum(int(op.size) * int(op.dtype.itemsize)
                         for op in operands)
    bytes_accessed += n_el * splits * tile_rows * _LANES * 4
    cost = pl.CostEstimate(flops=3 * total, transcendentals=0,
                           bytes_accessed=int(bytes_accessed))

    acc = pl.pallas_call(
        kernel,
        out_shape=out_shape,
        grid_spec=pltpu.PrefetchScalarGridSpec(
            num_scalar_prefetch=0,
            grid=grid,
            in_specs=in_specs,
            out_specs=out_spec),
        compiler_params=pltpu.CompilerParams(
            dimension_semantics=("parallel", "parallel", "arbitrary")),
        cost_estimate=cost,
    )(*operands)

    # Single small cross-lane reduction outside the hot loop.
    return jnp.sum(acc, axis=(1, 2, 3))


def _element_means(pred_list, targ_list, w_full):
    """Per-element mean(|p-t|) (or mean(w*|p-t|) when w_full is not None)."""
    shapes_equal = all(p.shape == pred_list[0].shape for p in pred_list)
    fuse = shapes_equal and (len(pred_list) == 1
                             or pred_list[0].size <= _FUSE_MAX_ELEMS)
    if fuse:
        numel = pred_list[0].size
        padded_rows, tr, sp, jt = _plan_tiling(numel)
        p3 = jnp.stack([_to_slab(p, padded_rows) for p in pred_list])
        t3 = jnp.stack([_to_slab(t, padded_rows) for t in targ_list])
        w3 = None if w_full is None else _to_slab(
            jnp.broadcast_to(w_full, pred_list[0].shape), padded_rows)[None]
        sums = _partial_l1_sums(p3, t3, w3, tr, sp, jt)
        return sums / jnp.float32(numel)

    # Mixed shapes or very large per-element tensors: one tiled call each.
    means = []
    for p, t in zip(pred_list, targ_list):
        numel = p.size
        padded_rows, tr, sp, jt = _plan_tiling(numel)
        p3 = _to_slab(p, padded_rows)[None]
        t3 = _to_slab(t, padded_rows)[None]
        w3 = None if w_full is None else _to_slab(
            jnp.broadcast_to(w_full, p.shape), padded_rows)[None]
        s = _partial_l1_sums(p3, t3, w3, tr, sp, jt)[0]
        means.append(s / jnp.float32(numel))
    return jnp.stack(means)


def base_loss_forward(preds, targets, weight=None):
    """Mirrors BaseLoss.forward (list or single-tensor preds)."""
    is_list = isinstance(preds, (list, tuple))
    pred_list = [jnp.asarray(p) for p in (preds if is_list else [preds])]
    targ_list = [jnp.asarray(t) for t in (targets if is_list else [targets])]

    if weight is None:
        weight = jnp.ones((1,), dtype=pred_list[0].dtype)
    weight = jnp.asarray(weight)

    if weight.size == 1:
        # Scalar weight: mean(w*|p-t|) == w * mean(|p-t|).  Fold the scale
        # outside the kernel and drop the third HBM stream entirely
        # (2 streams instead of 3 on the default ones-weight path).
        means = _element_means(pred_list, targ_list, None)
        means = means * weight.reshape(()).astype(jnp.float32)
    else:
        means = _element_means(pred_list, targ_list, weight)

    return jnp.mean(means) if is_list else means[0]


if __name__ == "__main__":
    key = jax.random.PRNGKey(0)
    k1, k2, k3, k4, k5 = jax.random.split(key, 5)

    # Small shapes consistent with the module (NCHW-style prediction maps).
    shape = (2, 4, 16, 16)

    preds = [
        jax.random.normal(k1, shape, dtype=jnp.float32),
        jax.random.normal(k2, shape, dtype=jnp.float32),
    ]
    targets = [
        jax.random.normal(k3, shape, dtype=jnp.float32),
        jax.random.normal(k4, shape, dtype=jnp.float32),
    ]

    # List-of-tensors path (N = 2), default weight = ones(1): fused single
    # pallas_call, 2-stream kernel.
    err_list = jax.block_until_ready(base_loss_forward(preds, targets))

    # Single-tensor path with an explicit full-shape weight: 3-stream kernel.
    w_full = jax.random.uniform(k5, shape, dtype=jnp.float32)
    err_single = jax.block_until_ready(
        base_loss_forward(preds[0], targets[0], weight=w_full))

    # Sanity check against pure-JAX references.
    ref_list = jnp.mean(
        jnp.stack([jnp.mean(jnp.abs(preds[i] - targets[i])) for i in range(2)]))
    ref_single = jnp.mean(w_full * jnp.abs(preds[0] - targets[0]))
    assert jnp.allclose(err_list, ref_list, rtol=1e-5, atol=1e-6)
    assert jnp.allclose(err_single, ref_single, rtol=1e-5, atol=1e-6)

    print("KERNEL_OK")
</pallas_src>

<mosaic_0001>
module attributes {stable_mosaic.version = 11 : i64} {
  func.func @_l1_acc_kernel(%arg0: i32, %arg1: i32, %arg2: i32, %arg3: memref<1x16x128xf32, #tpu.memory_space<vmem>>, %arg4: memref<1x16x128xf32, #tpu.memory_space<vmem>>, %arg5: memref<1x1x16x128xf32, #tpu.memory_space<vmem>>) attributes {dimension_semantics = [#tpu.dimension_semantics<parallel>, #tpu.dimension_semantics<parallel>, #tpu.dimension_semantics<arbitrary>], iteration_bounds = array<i64: 2, 1, 1>, scalar_prefetch = 0 : i64, scratch_operands = 0 : i64, tpu.core_type = #tpu.core_type<tc>, window_params = [{transform_indices = @transform_0, window_bounds = array<i64: 1, 16, 128>}, {transform_indices = @transform_1, window_bounds = array<i64: 1, 16, 128>}, {transform_indices = @transform_2, window_bounds = array<i64: 1, 1, 16, 128>}]} {
    %c0_i32 = arith.constant 0 : i32
    %0 = arith.cmpi eq, %arg2, %c0_i32 : i32
    %1 = arith.extui %0 : i1 to i32
    %c0_i32_0 = arith.constant 0 : i32
    %2 = arith.cmpi ne, %1, %c0_i32_0 : i32
    scf.if %2 {
      %cst = arith.constant 0.000000e+00 : f32
      %15 = vector.broadcast %cst : f32 to vector<16x128xf32>
      %c0_14 = arith.constant 0 : index
      %c0_15 = arith.constant 0 : index
      %c0_16 = arith.constant 0 : index
      %c0_17 = arith.constant 0 : index
      %16 = vector.load %arg5[%c0_14, %c0_15, %c0_16, %c0_17] : memref<1x1x16x128xf32, #tpu.memory_space<vmem>>, vector<1x1x16x128xf32>
      %17 = vector.shape_cast %16 : vector<1x1x16x128xf32> to vector<16x128xf32>
      %18 = vector.shape_cast %15 : vector<16x128xf32> to vector<1x1x16x128xf32>
      tpu.vector_store %arg5[%c0_14, %c0_15, %c0_16, %c0_17], %18 {strides = array<i32>} : memref<1x1x16x128xf32, #tpu.memory_space<vmem>>, vector<1x1x16x128xf32>,
    } else {
    }
    %c0 = arith.constant 0 : index
    %c0_1 = arith.constant 0 : index
    %c0_2 = arith.constant 0 : index
    %3 = vector.load %arg3[%c0, %c0_1, %c0_2] : memref<1x16x128xf32, #tpu.memory_space<vmem>>, vector<1x16x128xf32>
    %4 = vector.shape_cast %3 : vector<1x16x128xf32> to vector<16x128xf32>
    %c0_3 = arith.constant 0 : index
    %c0_4 = arith.constant 0 : index
    %c0_5 = arith.constant 0 : index
    %5 = vector.load %arg4[%c0_3, %c0_4, %c0_5] : memref<1x16x128xf32, #tpu.memory_space<vmem>>, vector<1x16x128xf32>
    %6 = vector.shape_cast %5 : vector<1x16x128xf32> to vector<16x128xf32>
    %c0_6 = arith.constant 0 : index
    %c0_7 = arith.constant 0 : index
    %c0_8 = arith.constant 0 : index
    %c0_9 = arith.constant 0 : index
    %7 = vector.load %arg5[%c0_6, %c0_7, %c0_8, %c0_9] : memref<1x1x16x128xf32, #tpu.memory_space<vmem>>, vector<1x1x16x128xf32>
    %8 = vector.shape_cast %7 : vector<1x1x16x128xf32> to vector<16x128xf32>
    %9 = arith.subf %4, %6 : vector<16x128xf32>
    %10 = math.absf %9 : vector<16x128xf32>
    %11 = arith.addf %8, %10 : vector<16x128xf32>
    %c0_10 = arith.constant 0 : index
    %c0_11 = arith.constant 0 : index
    %c0_12 = arith.constant 0 : index
    %c0_13 = arith.constant 0 : index
    %12 = vector.load %arg5[%c0_10, %c0_11, %c0_12, %c0_13] : memref<1x1x16x128xf32, #tpu.memory_space<vmem>>, vector<1x1x16x128xf32>
    %13 = vector.shape_cast %12 : vector<1x1x16x128xf32> to vector<16x128xf32>
    %14 = vector.shape_cast %11 : vector<16x128xf32> to vector<1x1x16x128xf32>
    tpu.vector_store %arg5[%c0_10, %c0_11, %c0_12, %c0_13], %14 {strides = array<i32>} : memref<1x1x16x128xf32, #tpu.memory_space<vmem>>, vector<1x1x16x128xf32>,
    return
  }
  func.func @transform_0(%arg0: i32, %arg1: i32, %arg2: i32) -> (i32, i32, i32) {
    %c1_i32 = arith.constant 1 : i32
    %0 = arith.muli %arg1, %c1_i32 : i32
    %1 = arith.addi %0, %arg2 : i32
    %c0_i32 = arith.constant 0 : i32
    %c0_i32_0 = arith.constant 0 : i32
    return %arg0, %1, %c0_i32 : i32, i32, i32
  }
  func.func @transform_1(%arg0: i32, %arg1: i32, %arg2: i32) -> (i32, i32, i32) {
    %c1_i32 = arith.constant 1 : i32
    %0 = arith.muli %arg1, %c1_i32 : i32
    %1 = arith.addi %0, %arg2 : i32
    %c0_i32 = arith.constant 0 : i32
    %c0_i32_0 = arith.constant 0 : i32
    return %arg0, %1, %c0_i32 : i32, i32, i32
  }
  func.func @transform_2(%arg0: i32, %arg1: i32, %arg2: i32) -> (i32, i32, i32, i32) {
    %c0_i32 = arith.constant 0 : i32
    %c0_i32_0 = arith.constant 0 : i32
    %c0_i32_1 = arith.constant 0 : i32
    return %arg0, %arg1, %c0_i32, %c0_i32_0 : i32, i32, i32, i32
  }
}

</mosaic_0001>

<llo_original>
// kernel: tpu_custom_call.1
$region0: #{tpu_custom_call.1}
  #allocation0 [shape = 'u32[]', space=smem, size = 0x4, offset = 0x4, fixed_abs, tag = 'smem constant byte address 0x4 - core index']
  #allocation1 [shape = 'u32[144,128]{1,0:T(1,128)}', space=vmem, size = 0x12000, scoped, tag = 'internal scratch']
  %s0 = inlined_call_operand.hbm [shape: f32[2,16,128], index: 0, kind: input, shape index: {}]
  %s1 = inlined_call_operand.hbm [shape: f32[2,16,128], index: 1, kind: input, shape index: {}]
  %s2 = inlined_call_operand.hbm [shape: f32[2,1,16,128], index: 2, kind: output, shape index: {}]
  %s3 = sld [smem:[#allocation0]]
  $region53: #{tpu_custom_call.1} parent=0
    _
  %s5 = ssub.s32 1, %s3
  %s6 = scalar_select 0, %s5, %s3
  $region1: #{tpu_custom_call.1} parent=0
    #allocation2 [shape = 'u8[16384]{0}', space=vmem, size = 0x4000, scoped, tag = 'input window, operand 0']
    #allocation3 [shape = 's32[2]{0}', space=sflag, size = 0x8, scoped, tag = 'scoped memory for tpu_custom_call.1']
    #allocation4 [shape = 's32[2]{0}', space=sflag, size = 0x8, scoped, tag = 'scoped memory for tpu_custom_call.1']
    #allocation5 [shape = 'u8[16384]{0}', space=vmem, size = 0x4000, scoped, tag = 'input window, operand 1']
    #allocation6 [shape = 's32[2]{0}', space=sflag, size = 0x8, scoped, tag = 'scoped memory for tpu_custom_call.1']
    #allocation7 [shape = 'u8[16384]{0}', space=vmem, size = 0x4000, scoped, tag = 'output window, operand 0']
    %7 = vsyncpa [#allocation3], 0
    %s8 = scalar_lea.sflag [#allocation3], 1
    %9 = vsyncpa %s8, 0
    %10 = vsyncpa [#allocation6], 0
    %s11 = scalar_lea.sflag [#allocation6], 1
    %12 = vsyncpa %s11, 0
    %13 = vsyncpa [#allocation4], 0
    %s14 = scalar_lea.sflag [#allocation4], 1
    %15 = vsyncpa %s14, 0
    loop: start=0, step=1, limit=4
    $region2: #{tpu_custom_call.1} parent=1 // loop_pre_header
      _
    $region3: #{tpu_custom_call.1} parent=1 // loop_header
      %s17 = sphi 0, %s21
      %p18 = scmp.ge.s32.totalorder %s17, 4
      %s24 = sphi 0, %s43
      %s25 = sphi 0, %s39
      %s26 = sphi 0, %s35
      %s27 = sphi 0, %s24
      %s28 = sphi 0, %s25
      %s29 = sphi 0, %s26
      %s30 = sphi 0, %s27
      %s31 = sphi 0, %s28
      %s32 = sphi 0, %s29
      %s50 = sphi 0, %s52
      %s53 = sphi 0, %s50
      %s54 = sphi 0, %s53
      %s70 = sphi 0, %s54
      %s80 = sphi 0, %s82
      %s83 = sphi 0, %s80
      %s84 = sphi 0, %s83
      %s100 = sphi 0, %s84
      %s108 = sphi 0, %s110
      %s111 = sphi 0, %s108
      %s112 = sphi 0, %s111
      %s128 = sphi 0, %s112
    $region4: #{tpu_custom_call.1} parent=1 // loop_header_branch
      %20 = sbr.rel (%p18) target = $region8
    $region5: #{tpu_custom_call.1} parent=1 // loop_body
      %s22 = ssub.s32 %s17, 1
      %s23 = ssub.s32 %s17, 2
      %s33 = sadd.s32 1, %s26
      %p34 = scmp.ge.s32.totalorder %s33, 1
      %s35 = scalar_select %p34, 0, %s33
      %s36 = sadd.s32 1, %s25
      %s37 = scalar_select %p34, %s36, %s25
      %p38 = scmp.ge.s32.totalorder %s37, 1
      %s39 = scalar_select %p38, 0, %s37
      %s40 = sadd.s32 1, %s24
      %s41 = scalar_select %p38, %s40, %s24
      %p42 = scmp.ge.s32.totalorder %s41, 2
      %s43 = scalar_select %p42, 0, %s41
      %s44 = sadd.s32 %s25, %s26
      %s45 = sadd.s32 %s39, %s35
      %s46 = ssub.s32 %s24, %s43
      %s47 = ssub.s32 %s44, %s45
      %s48 = sor.u32 %s46, %s47
      %p49 = scmp.eq.s32.totalorder %s48, 0
      %s51 = sadd.s32 %s50, 1
      %s52 = scalar_select %p49, %s50, %s51
      %p55 = pneg %p49
      %p56 = scmp.eq.s32.totalorder %s17, 1
      %p57 = por %p55, %p56
      %p58 = scmp.ne.s32.totalorder %s50, %s53
      %p59 = scmp.eq.s32.totalorder %s17, 0
      %p60 = por %p58, %p59
      %p61 = scmp.ne.s32.totalorder %s50, %s53
      %p62 = scmp.eq.s32.totalorder %s22, 1
      %p63 = por %p61, %p62
      %p64 = scmp.ne.s32.totalorder %s53, %s54
      %p65 = scmp.eq.s32.totalorder %s22, 0
      %p66 = por %p64, %p65
      %p67 = scmp.ne.s32.totalorder %s53, %s54
      %p68 = scmp.eq.s32.totalorder %s23, 1
      %p69 = por %p67, %p68
      %p71 = scmp.ne.s32.totalorder %s54, %s70
      %p72 = scmp.eq.s32.totalorder %s23, 0
      %p73 = por %p71, %p72
      %s74 = sadd.s32 %s25, %s26
      %s75 = sadd.s32 %s39, %s35
      %s76 = ssub.s32 %s24, %s43
      %s77 = ssub.s32 %s74, %s75
      %s78 = sor.u32 %s76, %s77
      %p79 = scmp.eq.s32.totalorder %s78, 0
      %s81 = sadd.s32 %s80, 1
      %s82 = scalar_select %p79, %s80, %s81
      %p85 = pneg %p79
      %p86 = scmp.eq.s32.totalorder %s17, 1
      %p87 = por %p85, %p86
      %p88 = scmp.ne.s32.totalorder %s80, %s83
      %p89 = scmp.eq.s32.totalorder %s17, 0
      %p90 = por %p88, %p89
      %p91 = scmp.ne.s32.totalorder %s80, %s83
      %p92 = scmp.eq.s32.totalorder %s22, 1
      %p93 = por %p91, %p92
      %p94 = scmp.ne.s32.totalorder %s83, %s84
      %p95 = scmp.eq.s32.totalorder %s22, 0
      %p96 = por %p94, %p95
      %p97 = scmp.ne.s32.totalorder %s83, %s84
      %p98 = scmp.eq.s32.totalorder %s23, 1
      %p99 = por %p97, %p98
      %p101 = scmp.ne.s32.totalorder %s84, %s100
      %p102 = scmp.eq.s32.totalorder %s23, 0
      %p103 = por %p101, %p102
      %s104 = ssub.s32 %s24, %s43
      %s105 = ssub.s32 %s25, %s39
      %s106 = sor.u32 %s104, %s105
      %p107 = scmp.eq.s32.totalorder %s106, 0
      %s109 = sadd.s32 %s108, 1
      %s110 = scalar_select %p107, %s108, %s109
      %p113 = pneg %p107
      %p114 = scmp.eq.s32.totalorder %s17, 1
      %p115 = por %p113, %p114
      %p116 = scmp.ne.s32.totalorder %s108, %s111
      %p117 = scmp.eq.s32.totalorder %s17, 0
      %p118 = por %p116, %p117
      %p119 = scmp.ne.s32.totalorder %s108, %s111
      %p120 = scmp.eq.s32.totalorder %s22, 1
      %p121 = por %p119, %p120
      %p122 = scmp.ne.s32.totalorder %s111, %s112
      %p123 = scmp.eq.s32.totalorder %s22, 0
      %p124 = por %p122, %p123
      %p125 = scmp.ne.s32.totalorder %s111, %s112
      %p126 = scmp.eq.s32.totalorder %s23, 1
      %p127 = por %p125, %p126
      %p129 = scmp.ne.s32.totalorder %s112, %s128
      %p130 = scmp.eq.s32.totalorder %s23, 0
      %p131 = por %p129, %p130
      %p132 = scmp.le.s32.totalorder 1, %s17
      %p133 = scmp.lt.s32.totalorder %s17, 3
      %p134 = pnand %p132, %p133
      %p135 = pneg %p134
      // Predicated region
      $region9: #{tpu_custom_call.1} parent=5 // pred_check
        _
      $region10: #{tpu_custom_call.1} parent=5 // pred_check_branch
        %137 = sbr.rel (%p134) target = $region12
      $region11: #{tpu_custom_call.1} parent=5 // pred_region
        %s138 = ssub.s32 %s17, 1
      $region12: #{tpu_custom_call.1} parent=5 // pred_fallthru
        _
      %p139 = scmp.lt.s32.totalorder %s17, 2
      // Predicated region
      $region13: #{tpu_custom_call.1} parent=5 // pred_check
        %p140 = pneg %p139
      $region14: #{tpu_custom_call.1} parent=5 // pred_check_branch
        %142 = sbr.rel (%p140) target = $region16
      $region15: #{tpu_custom_call.1} parent=5 // pred_region
        // Predicated region
        $region17: #{tpu_custom_call.1} parent=15 // pred_check
          %p143 = pneg %p60
        $region18: #{tpu_custom_call.1} parent=15 // pred_check_branch
          %145 = sbr.rel (%p143) target = $region20
        $region19: #{tpu_custom_call.1} parent=15 // pred_region
          %s146 = sand.u32 %s50, 1
          %s147 = scalar_lea.sflag [#allocation3], %s146
          %s148 = sand.u32 %s50, 1
          %s149 = smul.addr %s148, 16
          %s150 = scalar_lea.vmem [#allocation2], %s149
          %s151 = sadd.s32 %s25, %s26
          %s152 = smul.u32 2, %s151
          %s154 = ssub.s32 256, 256
          %155 = vsyncadd %s147, %s154
          %s156 = smul.addr %s24, 2
          %s157 = sadd.s32 %s152, %s156
          %s158 = smul.addr %s157, 128
          %s159 = scalar_lea.hbm %s0, %s158
          %s160 = sshll.u32 %s150, 4
          %s161 = int_to_ptr.vmem [resolvable:$true] %s160
          %166 = dma.hbm_to_vmem [thread:$0]  %s159, 256, %s161, %s147, 128, 128, 8
        $region20: #{tpu_custom_call.1} parent=15 // pred_fallthru
          _
        // Predicated region
        $region21: #{tpu_custom_call.1} parent=15 // pred_check
          %p167 = pneg %p90
        $region22: #{tpu_custom_call.1} parent=15 // pred_check_branch
          %169 = sbr.rel (%p167) target = $region24
        $region23: #{tpu_custom_call.1} parent=15 // pred_region
          %s170 = sand.u32 %s80, 1
          %s171 = scalar_lea.sflag [#allocation6], %s170
          %s172 = sand.u32 %s80, 1
          %s173 = smul.addr %s172, 16
          %s174 = scalar_lea.vmem [#allocation5], %s173
          %s175 = sadd.s32 %s25, %s26
          %s176 = smul.u32 2, %s175
          %s178 = ssub.s32 256, 256
          %179 = vsyncadd %s171, %s178
          %s180 = smul.addr %s24, 2
          %s181 = sadd.s32 %s176, %s180
          %s182 = smul.addr %s181, 128
          %s183 = scalar_lea.hbm %s1, %s182
          %s184 = sshll.u32 %s174, 4
          %s185 = int_to_ptr.vmem [resolvable:$true] %s184
          %190 = dma.hbm_to_vmem [thread:$0]  %s183, 256, %s185, %s171, 128, 128, 8
        $region24: #{tpu_custom_call.1} parent=15 // pred_fallthru
          _
      $region16: #{tpu_custom_call.1} parent=5 // pred_fallthru
        _
      %p191 = scmp.le.s32.totalorder 1, %s17
      %p192 = scmp.lt.s32.totalorder %s17, 3
      %p193 = pnand %p191, %p192
      %p194 = pneg %p193
      // Predicated region
      $region25: #{tpu_custom_call.1} parent=5 // pred_check
        _
      $region26: #{tpu_custom_call.1} parent=5 // pred_check_branch
        %196 = sbr.rel (%p193) target = $region28
      $region27: #{tpu_custom_call.1} parent=5 // pred_region
        %s197 = ssub.s32 %s17, 1
        %s198 = sand.u32 %s53, 1
        %s199 = scalar_lea.sflag [#allocation3], %s198
        %s200 = sand.u32 %s53, 1
        %s201 = smul.addr %s200, 16
        %s202 = scalar_lea.vmem [#allocation2], %s201
        // Predicated region
        $region29: #{tpu_custom_call.1} parent=27 // pred_check
          %p203 = pneg %p66
        $region30: #{tpu_custom_call.1} parent=27 // pred_check_branch
          %205 = sbr.rel (%p203) target = $region32
        $region31: #{tpu_custom_call.1} parent=27 // pred_region
          %206 = dma.done %s199, 256
        $region32: #{tpu_custom_call.1} parent=27 // pred_fallthru
          _
        %s207 = sand.u32 %s83, 1
        %s208 = scalar_lea.sflag [#allocation6], %s207
        %s209 = sand.u32 %s83, 1
        %s210 = smul.addr %s209, 16
        %s211 = scalar_lea.vmem [#allocation5], %s210
        // Predicated region
        $region33: #{tpu_custom_call.1} parent=27 // pred_check
          %p212 = pneg %p96
        $region34: #{tpu_custom_call.1} parent=27 // pred_check_branch
          %214 = sbr.rel (%p212) target = $region36
        $region35: #{tpu_custom_call.1} parent=27 // pred_region
          %215 = dma.done %s208, 256
        $region36: #{tpu_custom_call.1} parent=27 // pred_fallthru
          _
        %s216 = sand.u32 %s53, 1
        %s217 = scalar_lea.sflag [#allocation3], %s216
        %s218 = sand.u32 %s53, 1
        %s219 = smul.addr %s218, 16
        %s220 = scalar_lea.vmem [#allocation2], %s219
        %p221 = pneg %p66
        %p222 = pneg %p63
        %s223 = sand.u32 %s83, 1
        %s224 = scalar_lea.sflag [#allocation6], %s223
        %s225 = sand.u32 %s83, 1
        %s226 = smul.addr %s225, 16
        %s227 = scalar_lea.vmem [#allocation5], %s226
        %p228 = pneg %p96
        %p229 = pneg %p93
        %p230 = pneg %p124
        %p231 = pneg %p121
        %s232 = sand.u32 %s111, 1
        %s233 = scalar_lea.sflag [#allocation4], %s232
        %s234 = sand.u32 %s111, 1
        %s235 = smul.addr %s234, 16
        %s236 = scalar_lea.vmem [#allocation7], %s235
        %s237 = sadd.s32 %s28, %s29
        %s238 = smul.u32 2, %s237
        %s239 = sadd.s32 %s28, %s29
        %s240 = smul.u32 2, %s239
        %p241 = scmp.eq.s32.totalorder %s29, 0
        // Predicated region
        $region37: #{tpu_custom_call.1} parent=27 // pred_check
          %p242 = pneg %p241
        $region38: #{tpu_custom_call.1} parent=27 // pred_check_branch
          %244 = sbr.rel (%p242) target = $region40
        $region39: #{tpu_custom_call.1} parent=27 // pred_region
          %245 = vst [vmem:[%s236] sm:$0xff] 0.0
          %246 = vst [vmem:[%s236 + $0x8] sm:$0xff] 0.0
        $region40: #{tpu_custom_call.1} parent=27 // pred_fallthru
          _
        %v247 = vld [vmem:[%s202] sm:$0xff]
        %v248 = vld [vmem:[%s202 + $0x8] sm:$0xff]
        %v249 = vld [vmem:[%s211] sm:$0xff]
        %v250 = vld [vmem:[%s211 + $0x8] sm:$0xff]
        %v251 = vld [vmem:[%s236] sm:$0xff]
        %v252 = vld [vmem:[%s236 + $0x8] sm:$0xff]
        %v253 = vsub.f32 %v247, %v249
        %v254 = vsub.f32 %v248, %v250
        %v255 = vand.u32 2147483647, %v253
        %v256 = vand.u32 2147483647, %v254
        %v257 = vadd.f32 %v251, %v255
        %v258 = vadd.f32 %v252, %v256
        %259 = vst [vmem:[%s236] sm:$0xff] %v257
        %260 = vst [vmem:[%s236 + $0x8] sm:$0xff] %v258
        %s261 = sand.u32 %s111, 1
        %s262 = scalar_lea.sflag [#allocation4], %s261
        %s263 = sand.u32 %s111, 1
        %s264 = smul.addr %s263, 16
        %s265 = scalar_lea.vmem [#allocation7], %s264
        // Predicated region
        $region41: #{tpu_custom_call.1} parent=27 // pred_check
          %p266 = pneg %p121
        $region42: #{tpu_custom_call.1} parent=27 // pred_check_branch
          %268 = sbr.rel (%p266) target = $region44
        $region43: #{tpu_custom_call.1} parent=27 // pred_region
          %s270 = ssub.s32 256, 256
          %271 = vsyncadd %s262, %s270
          %s272 = smul.addr %s28, 2
          %s273 = smul.addr %s27, 2
          %s274 = sadd.s32 %s272, %s273
          %s275 = smul.addr %s274, 128
          %s276 = scalar_lea.hbm %s2, %s275
          %s277 = sshll.u32 %s265, 4
          %s278 = int_to_ptr.vmem [resolvable:$true] %s277
          %283 = dma.vmem_to_hbm [thread:$0]  %s278, 256, %s276, %s262, 128, 128, 8
        $region44: #{tpu_custom_call.1} parent=27 // pred_fallthru
          _
      $region28: #{tpu_custom_call.1} parent=5 // pred_fallthru
        _
      %p284 = scmp.le.s32.totalorder 2, %s17
      // Predicated region
      $region45: #{tpu_custom_call.1} parent=5 // pred_check
        %p285 = pneg %p284
      $region46: #{tpu_custom_call.1} parent=5 // pred_check_branch
        %287 = sbr.rel (%p285) target = $region48
      $region47: #{tpu_custom_call.1} parent=5 // pred_region
        %s288 = ssub.s32 %s17, 2
        // Predicated region
        $region49: #{tpu_custom_call.1} parent=47 // pred_check
          %p289 = pneg %p127
        $region50: #{tpu_custom_call.1} parent=47 // pred_check_branch
          %291 = sbr.rel (%p289) target = $region52
        $region51: #{tpu_custom_call.1} parent=47 // pred_region
          %s292 = sand.u32 %s112, 1
          %s293 = scalar_lea.sflag [#allocation4], %s292
          %s294 = sand.u32 %s112, 1
          %s295 = smul.addr %s294, 16
          %s296 = scalar_lea.vmem [#allocation7], %s295
          %297 = dma.done %s293, 256
        $region52: #{tpu_custom_call.1} parent=47 // pred_fallthru
          _
      $region48: #{tpu_custom_call.1} parent=5 // pred_fallthru
        _
    $region6: #{tpu_custom_call.1} parent=1 // loop_footer
      %s21 = sadd.s32 1, %s17
    $region7: #{tpu_custom_call.1} parent=1 // loop_footer_branch
      %16 = sbr.rel target = $region3
    $region8: #{tpu_custom_call.1} parent=1 // loop_exit
      _
    %298 = vsyncpa [#allocation3], 1
    %s299 = scalar_lea.sflag [#allocation3], 1
    %300 = vsyncpa %s299, 1
    %301 = vsyncpa [#allocation6], 1
    %s302 = scalar_lea.sflag [#allocation6], 1
    %303 = vsyncpa %s302, 1
    %304 = vsyncpa [#allocation4], 1
    %s305 = scalar_lea.sflag [#allocation4], 1
    %306 = vsyncpa %s305, 1

</llo_original>
